<compile_context>
chip_gen: v6e
topology: v6e:2x2x1
jax: 0.10.0
libtpu: 0.0.40
codegen_flags: <defaults>
</compile_context>

<pallas_src>
import math

import jax
import jax.numpy as jnp
from jax import lax
from jax.experimental import pallas as pl
from jax.experimental.pallas import tpu as pltpu

_INV_SQRT2 = 1.0 / math.sqrt(2.0)


def _round_up(x, n):
    return (x + n - 1) // n * n


def _recon_head_kernel(x_ref, w1_ref, b1_ref, w2_ref, b2_ref, o_ref):
    # In-kernel cast of the x tile to the MXU dtype (bf16). Doing the cast here (VPU work
    # hidden under the DMA) instead of in the wrapper avoids a separate XLA pass over x
    # in HBM — the kernel is memory-bound, so this halves x traffic.
    x = x_ref[...].astype(w1_ref.dtype)
    # First linear: bf16 operands, f32 MXU accumulation; bias add in f32.
    h = jnp.dot(x, w1_ref[...], preferred_element_type=jnp.float32)
    h = h + b1_ref[...]
    # Exact erf GELU in f32 (matches torch.nn.GELU() default; also safe on v5e).
    # TODO(synk): if a v6e/v7x profile shows VALU-bound, switch to tanh GELU (rides the EUP slot).
    h = 0.5 * h * (1.0 + lax.erf(h * _INV_SQRT2))
    # Second linear: cast activations to the weight dtype for the MXU, f32 accumulate.
    out = jnp.dot(h.astype(w2_ref.dtype), w2_ref[...],
                  preferred_element_type=jnp.float32)
    # w2 may be lane-padded (multiple of 128) for the MXU; keep only the real target_dim
    # columns so the HBM writeback carries no zero-pad.
    t = o_ref.shape[-1]
    out = out[:, :t] + b2_ref[...]
    o_ref[...] = out.astype(o_ref.dtype)


def dynamic_recon_head(x, target_dim, params, *, compute_dtype=jnp.bfloat16,
                       tm=None, single_buffer_weights=False):
    """x: (bs, ch, input_dim); returns (bs, ch, target_dim) in x.dtype."""
    bs, ch, input_dim = x.shape
    w1, b1, w2, b2 = params
    hidden_dim = w1.shape[1]
    assert w1.shape == (input_dim, hidden_dim)
    assert w2.shape == (hidden_dim, target_dim)

    m = bs * ch
    out_dtype = x.dtype
    x_bytes = jnp.dtype(x.dtype).itemsize
    w_bytes = jnp.dtype(compute_dtype).itemsize
    out_bytes = jnp.dtype(out_dtype).itemsize

    # Lane-padded sizes (narrow VMEM buffers are padded to 128 lanes internally).
    hidden_lane = _round_up(hidden_dim, 128)
    t_pad = _round_up(target_dim, 128)

    # --- Row tile: big tiles amortize the ~0.35us/step pipeline overhead; keep multiples
    #     of 256 (full v6e/v7x MXU depth) and >=2 tiles so both v7x TensorCores get work.
    if tm is None:
        if m >= 8192:
            tm = 2048
        elif m >= 2048:
            tm = _round_up(pl.cdiv(m, 4), 256)     # >=4 tiles, each >=512 rows
        elif m >= 1024:
            tm = _round_up(pl.cdiv(m, 2), 256)     # 2 tiles -> both v7x TensorCores busy
        else:
            tm = _round_up(m, 8)                   # tiny batch: single tile
    # Cap tm so the row-dependent VMEM working set stays well inside v7x's 64 MiB.
    row_bytes = (2 * input_dim * x_bytes           # x tile (f32), double-buffered
                 + input_dim * w_bytes             # bf16 copy of x tile
                 + hidden_lane * (4 + w_bytes)     # f32 h + bf16 h
                 + 3 * t_pad * 4)                  # f32 matmul result + dbl-buffered out tile
    tm_cap = max(8, int((32 * 2 ** 20) // row_bytes) // 8 * 8)
    tm = max(8, min(_round_up(tm, 8), tm_cap, _round_up(m, 8)))
    grid_m = pl.cdiv(m, tm)   # ragged last tile: OOB reads padded, OOB writes dropped

    # x: reshape only — no wrapper-side cast or pad (the kernel casts on the fly).
    x2d = x.reshape(m, input_dim)

    # Small resident operands: cast (and lane-pad w2) once in the wrapper; reused by every tile.
    w1_c = w1.astype(compute_dtype)
    w2_c = w2.astype(compute_dtype)
    if t_pad != target_dim:
        w2_c = jnp.pad(w2_c, ((0, 0), (0, t_pad - target_dim)))
    b1_2d = b1.astype(jnp.float32).reshape(1, hidden_dim)
    b2_2d = b2.astype(jnp.float32).reshape(1, target_dim)

    # --- VMEM budget: keep headroom under v7x's 64 MiB per-core VMEM (cap at 48 MiB).
    weight_bufs = 1 if single_buffer_weights else 2
    est = (tm * row_bytes
           + weight_bufs * (input_dim * hidden_dim * w_bytes
                            + hidden_dim * t_pad * w_bytes
                            + hidden_lane * 4 + t_pad * 4))
    vmem_limit = int(min(48 * 2 ** 20, max(16 * 2 ** 20, 2 * est)))
    # TODO(synk): for very large input_dim/hidden_dim (resident bf16 weights > ~20 MiB) add a
    # K-split grid axis ("arbitrary") instead of keeping both weights fully resident.

    cost = pl.CostEstimate(
        flops=2 * m * (input_dim * hidden_dim + hidden_dim * target_dim),
        transcendentals=m * hidden_dim,
        bytes_accessed=(m * input_dim * x_bytes
                        + input_dim * hidden_dim * w_bytes
                        + hidden_dim * t_pad * w_bytes
                        + (hidden_dim + target_dim) * 4
                        + m * target_dim * out_bytes),
    )

    def _const_spec(shape):
        # Weights/biases are VMEM-resident (constant index_map). Optionally single-buffer
        # them (halves resident-weight VMEM; only matters for very large hidden dims).
        if single_buffer_weights:
            return pl.BlockSpec(shape, lambda i: (0, 0), pipeline_mode=pl.Buffered(1))
        return pl.BlockSpec(shape, lambda i: (0, 0))

    out2d = pl.pallas_call(
        _recon_head_kernel,
        out_shape=jax.ShapeDtypeStruct((m, target_dim), out_dtype),
        grid=(grid_m,),
        in_specs=[
            pl.BlockSpec((tm, input_dim), lambda i: (i, 0)),   # x tile (pipelined, f32)
            _const_spec((input_dim, hidden_dim)),              # w1 (resident)
            _const_spec((1, hidden_dim)),                      # b1 (resident)
            _const_spec((hidden_dim, t_pad)),                  # w2 (resident, lane-padded)
            _const_spec((1, target_dim)),                      # b2 (resident, unpadded)
        ],
        # Unpadded output: block last dim == full array last dim, so no zero-pad writeback.
        out_specs=pl.BlockSpec((tm, target_dim), lambda i: (i, 0)),
        compiler_params=pltpu.CompilerParams(
            dimension_semantics=("parallel",),   # no cross-tile reduction -> megacore ok
            vmem_limit_bytes=vmem_limit,
        ),
        cost_estimate=cost,
    )(x2d, w1_c, b1_2d, w2_c, b2_2d)

    return out2d.reshape(bs, ch, target_dim)


def init_params(key, input_dim, hidden_dim, target_dim, dtype=jnp.float32):
    """Deterministic init mimicking torch.nn.Linear default (uniform +-1/sqrt(fan_in))."""
    k1, k2, k3, k4 = jax.random.split(key, 4)
    bound1 = 1.0 / math.sqrt(input_dim)
    bound2 = 1.0 / math.sqrt(hidden_dim)
    w1 = jax.random.uniform(k1, (input_dim, hidden_dim), dtype, -bound1, bound1)
    b1 = jax.random.uniform(k2, (hidden_dim,), dtype, -bound1, bound1)
    w2 = jax.random.uniform(k3, (hidden_dim, target_dim), dtype, -bound2, bound2)
    b2 = jax.random.uniform(k4, (target_dim,), dtype, -bound2, bound2)
    return w1, b1, w2, b2


def _reference_bf16(x, params, target_dim):
    """Matched-precision reference (same bf16 operand / f32 accumulate path as the kernel)."""
    w1, b1, w2, b2 = params
    bs, ch, input_dim = x.shape
    xb = x.reshape(bs * ch, input_dim).astype(jnp.bfloat16)
    h = jnp.dot(xb, w1.astype(jnp.bfloat16), preferred_element_type=jnp.float32) + b1
    h = 0.5 * h * (1.0 + lax.erf(h * _INV_SQRT2))
    out = jnp.dot(h.astype(jnp.bfloat16), w2.astype(jnp.bfloat16),
                  preferred_element_type=jnp.float32) + b2
    return out.reshape(bs, ch, target_dim)


def _reference_f32(x, params, target_dim):
    """Full-f32 torch-equivalent reference."""
    w1, b1, w2, b2 = params
    bs, ch, input_dim = x.shape
    h = x.reshape(bs * ch, input_dim) @ w1 + b1
    h = jax.nn.gelu(h, approximate=False)
    return (h @ w2 + b2).reshape(bs, ch, target_dim)


if __name__ == "__main__":
    key = jax.random.PRNGKey(0)
    kx, kp, kx2, kp2 = jax.random.split(key, 4)

    # Small shapes consistent with the module: x = (bs, channel, patch_size*patch_size).
    bs, ch = 2, 4
    patch_size = 16
    input_dim = patch_size * patch_size              # 256
    hidden_dim_ratio = 0.5
    hidden_dim = int(input_dim * hidden_dim_ratio)   # 128
    target_dim = ch                                  # "usually the channel count"

    x = jax.random.normal(kx, (bs, ch, input_dim), dtype=jnp.float32)
    params = init_params(kp, input_dim, hidden_dim, target_dim)

    out = dynamic_recon_head(x, target_dim, params)
    jax.block_until_ready(out)
    assert out.shape == (bs, ch, target_dim)

    ref_b = _reference_bf16(x, params, target_dim)
    err_tight = float(jnp.max(jnp.abs(out - ref_b)))
    assert jnp.allclose(out, ref_b, atol=2e-3, rtol=2e-3), err_tight

    ref_f = _reference_f32(x, params, target_dim)
    err_loose = float(jnp.max(jnp.abs(out - ref_f)))
    assert jnp.allclose(out, ref_f, atol=5e-2, rtol=5e-2), err_loose

    # Second check: multi-tile grid with a ragged last tile (m % tm != 0) and a
    # target_dim that is neither the channel count nor a multiple of 128.
    bs2, ch2, target_dim2 = 3, 401, 5                # m = 1203 -> tm = 768, 2 tiles (ragged)
    x2 = jax.random.normal(kx2, (bs2, ch2, input_dim), dtype=jnp.float32)
    params2 = init_params(kp2, input_dim, hidden_dim, target_dim2)
    out2 = dynamic_recon_head(x2, target_dim2, params2)
    jax.block_until_ready(out2)
    assert out2.shape == (bs2, ch2, target_dim2)
    ref2 = _reference_bf16(x2, params2, target_dim2)
    err2 = float(jnp.max(jnp.abs(out2 - ref2)))
    assert jnp.allclose(out2, ref2, atol=2e-3, rtol=2e-3), err2

    print("KERNEL_OK")
</pallas_src>

<mosaic_0001>
module attributes {stable_mosaic.version = 11 : i64} {
  func.func @_recon_head_kernel(%arg0: i32, %arg1: memref<8x256xf32, #tpu.memory_space<vmem>>, %arg2: memref<256x128xbf16, #tpu.memory_space<vmem>>, %arg3: memref<1x128xf32, #tpu.memory_space<vmem>>, %arg4: memref<128x128xbf16, #tpu.memory_space<vmem>>, %arg5: memref<1x4xf32, #tpu.memory_space<vmem>>, %arg6: memref<8x4xf32, #tpu.memory_space<vmem>>) attributes {dimension_semantics = [#tpu.dimension_semantics<parallel>], iteration_bounds = array<i64: 1>, scalar_prefetch = 0 : i64, scratch_operands = 0 : i64, tpu.core_type = #tpu.core_type<tc>, window_params = [{transform_indices = @transform_0, window_bounds = array<i64: 8, 256>}, {pipeline_mode = #tpu.pipeline_mode<synchronous>, transform_indices = @transform_1, window_bounds = array<i64: 256, 128>}, {pipeline_mode = #tpu.pipeline_mode<synchronous>, transform_indices = @transform_2, window_bounds = array<i64: 1, 128>}, {pipeline_mode = #tpu.pipeline_mode<synchronous>, transform_indices = @transform_3, window_bounds = array<i64: 128, 128>}, {pipeline_mode = #tpu.pipeline_mode<synchronous>, transform_indices = @transform_4, window_bounds = array<i64: 1, 4>}, {transform_indices = @transform_5, window_bounds = array<i64: 8, 4>}]} {
    %c0 = arith.constant 0 : index
    %c0_0 = arith.constant 0 : index
    %0 = vector.load %arg1[%c0, %c0_0] : memref<8x256xf32, #tpu.memory_space<vmem>>, vector<8x256xf32>
    %1 = arith.truncf %0 : vector<8x256xf32> to vector<8x256xbf16>
    %c0_1 = arith.constant 0 : index
    %c0_2 = arith.constant 0 : index
    %2 = vector.load %arg2[%c0_1, %c0_2] : memref<256x128xbf16, #tpu.memory_space<vmem>>, vector<256x128xbf16>
    %cst = arith.constant dense<0.000000e+00> : vector<8x128xf32>
    %3 = tpu.matmul %1, %2, %cst {dimension_numbers = #tpu.dot_dimension_numbers<[1], [0], [0], [1], [0, 0, 1, 1], [], []>} : vector<8x256xbf16>, vector<256x128xbf16>, vector<8x128xf32> -> vector<8x128xf32>
    %c0_3 = arith.constant 0 : index
    %c0_4 = arith.constant 0 : index
    %4 = vector.load %arg3[%c0_3, %c0_4] : memref<1x128xf32, #tpu.memory_space<vmem>>, vector<1x128xf32>
    %5 = vector.broadcast %4 : vector<1x128xf32> to vector<8x128xf32>
    %6 = arith.addf %3, %5 : vector<8x128xf32>
    %cst_5 = arith.constant 5.000000e-01 : f32
    %7 = vector.broadcast %cst_5 : f32 to vector<8x128xf32>
    %8 = arith.mulf %7, %6 : vector<8x128xf32>
    %cst_6 = arith.constant 0.707106769 : f32
    %9 = vector.broadcast %cst_6 : f32 to vector<8x128xf32>
    %10 = arith.mulf %6, %9 : vector<8x128xf32>
    %11 = math.erf %10 : vector<8x128xf32>
    %cst_7 = arith.constant 1.000000e+00 : f32
    %12 = vector.broadcast %cst_7 : f32 to vector<8x128xf32>
    %13 = arith.addf %12, %11 : vector<8x128xf32>
    %14 = arith.mulf %8, %13 : vector<8x128xf32>
    %15 = arith.truncf %14 : vector<8x128xf32> to vector<8x128xbf16>
    %c0_8 = arith.constant 0 : index
    %c0_9 = arith.constant 0 : index
    %16 = vector.load %arg4[%c0_8, %c0_9] : memref<128x128xbf16, #tpu.memory_space<vmem>>, vector<128x128xbf16>
    %cst_10 = arith.constant dense<0.000000e+00> : vector<8x128xf32>
    %17 = tpu.matmul %15, %16, %cst_10 {dimension_numbers = #tpu.dot_dimension_numbers<[1], [0], [0], [1], [0, 0, 1, 1], [], []>} : vector<8x128xbf16>, vector<128x128xbf16>, vector<8x128xf32> -> vector<8x128xf32>
    %18 = vector.extract_strided_slice %17 {offsets = [0, 0], sizes = [8, 4], strides = [1, 1]} : vector<8x128xf32> to vector<8x4xf32>
    %c0_11 = arith.constant 0 : index
    %c0_12 = arith.constant 0 : index
    %19 = vector.load %arg5[%c0_11, %c0_12] : memref<1x4xf32, #tpu.memory_space<vmem>>, vector<1x4xf32>
    %20 = vector.broadcast %19 : vector<1x4xf32> to vector<8x4xf32>
    %21 = arith.addf %18, %20 : vector<8x4xf32>
    %c0_13 = arith.constant 0 : index
    %c0_14 = arith.constant 0 : index
    %22 = vector.load %arg6[%c0_13, %c0_14] : memref<8x4xf32, #tpu.memory_space<vmem>>, vector<8x4xf32>
    tpu.vector_store %arg6[%c0_13, %c0_14], %21 {strides = array<i32>} : memref<8x4xf32, #tpu.memory_space<vmem>>, vector<8x4xf32>,
    return
  }
  func.func @transform_0(%arg0: i32) -> (i32, i32) {
    %c0_i32 = arith.constant 0 : i32
    %c0_i32_0 = arith.constant 0 : i32
    return %arg0, %c0_i32 : i32, i32
  }
  func.func @transform_1(%arg0: i32) -> (i32, i32) {
    %c0_i32 = arith.constant 0 : i32
    %c0_i32_0 = arith.constant 0 : i32
    %c0_i32_1 = arith.constant 0 : i32
    return %c0_i32, %c0_i32_0 : i32, i32
  }
  func.func @transform_2(%arg0: i32) -> (i32, i32) {
    %c0_i32 = arith.constant 0 : i32
    %c0_i32_0 = arith.constant 0 : i32
    %c0_i32_1 = arith.constant 0 : i32
    return %c0_i32, %c0_i32_0 : i32, i32
  }
  func.func @transform_3(%arg0: i32) -> (i32, i32) {
    %c0_i32 = arith.constant 0 : i32
    %c0_i32_0 = arith.constant 0 : i32
    %c0_i32_1 = arith.constant 0 : i32
    return %c0_i32, %c0_i32_0 : i32, i32
  }
  func.func @transform_4(%arg0: i32) -> (i32, i32) {
    %c0_i32 = arith.constant 0 : i32
    %c0_i32_0 = arith.constant 0 : i32
    %c0_i32_1 = arith.constant 0 : i32
    return %c0_i32, %c0_i32_0 : i32, i32
  }
  func.func @transform_5(%arg0: i32) -> (i32, i32) {
    %c0_i32 = arith.constant 0 : i32
    %c0_i32_0 = arith.constant 0 : i32
    return %arg0, %c0_i32 : i32, i32
  }
}

</mosaic_0001>

<llo_original>
// kernel: tpu_custom_call.1
$region0: #{tpu_custom_call.1}
  #allocation0 [shape = 'u32[]', space=smem, size = 0x4, offset = 0x4, fixed_abs, tag = 'smem constant byte address 0x4 - core index']
  #allocation1 [shape = 'u32[144,128]{1,0:T(1,128)}', space=vmem, size = 0x12000, scoped, tag = 'internal scratch']
  %s0 = inlined_call_operand.hbm [shape: f32[8,256], index: 0, kind: input, shape index: {}]
  %s1 = inlined_call_operand.hbm [shape: bf16[256,128], index: 1, kind: input, shape index: {}]
  %s2 = inlined_call_operand.vmem [shape: f32[1,128], index: 2, kind: input, shape index: {}]
  %s3 = inlined_call_operand.hbm [shape: bf16[128,128], index: 3, kind: input, shape index: {}]
  %s4 = inlined_call_operand.vmem [shape: f32[1,4], index: 4, kind: input, shape index: {}]
  %s5 = inlined_call_operand.vmem [shape: f32[8,4], index: 5, kind: output, shape index: {}]
  %s6 = sld [smem:[#allocation0]]
  $region42: #{tpu_custom_call.1} parent=0
    _
  %s8 = ssub.s32 1, %s6
  %s9 = scalar_select 0, %s8, %s6
  $region1: #{tpu_custom_call.1} parent=0
    #allocation2 [shape = 'u8[8192]{0}', space=vmem, size = 0x2000, scoped, tag = 'input window, operand 0, single buffered']
    #allocation3 [shape = 's32[1]{0}', space=sflag, size = 0x4, scoped, tag = 'scoped memory for tpu_custom_call.1']
    #allocation4 [shape = 'u8[65536]{0}', space=vmem, size = 0x10000, scoped, tag = 'input window, operand 1, single buffered']
    #allocation5 [shape = 's32[1]{0}', space=sflag, size = 0x4, scoped, tag = 'scoped memory for tpu_custom_call.1']
    #allocation6 [shape = 'u8[32768]{0}', space=vmem, size = 0x8000, scoped, tag = 'input window, operand 3, single buffered']
    %10 = vsyncpa [#allocation3], 0
    %11 = vsyncpa [#allocation5], 0
    // Predicated region
    $region2: #{tpu_custom_call.1} parent=1 // pred_check
      _
    $region3: #{tpu_custom_call.1} parent=1 // pred_check_branch
      %13 = sbr.rel (0) target = $region5
    $region4: #{tpu_custom_call.1} parent=1 // pred_region
      %s15 = ssub.s32 256, 256
      %16 = vsyncadd [#allocation3], %s15
      %s18 = sshll.u32 [#allocation2], 4
      %s19 = int_to_ptr.vmem [resolvable:$true] %s18
      %21 = dma.hbm_to_vmem [thread:$0]  %s0, 256, %s19, [#allocation3]
    $region5: #{tpu_custom_call.1} parent=1 // pred_fallthru
      _
    // Predicated region
    $region6: #{tpu_custom_call.1} parent=1 // pred_check
      _
    $region7: #{tpu_custom_call.1} parent=1 // pred_check_branch
      %23 = sbr.rel (0) target = $region9
    $region8: #{tpu_custom_call.1} parent=1 // pred_region
      %s25 = ssub.s32 2048, 2048
      %26 = vsyncadd [#allocation5], %s25
      %s27 = sshll.u32 [#allocation4], 4
      %s28 = int_to_ptr.vmem [resolvable:$true] %s27
      %33 = dma.hbm_to_vmem [thread:$0]  %s1, 2048, %s28, [#allocation5], 64, 64, 4
    $region9: #{tpu_custom_call.1} parent=1 // pred_fallthru
      _
    // Predicated region
    $region10: #{tpu_custom_call.1} parent=1 // pred_check
      _
    $region11: #{tpu_custom_call.1} parent=1 // pred_check_branch
      %35 = sbr.rel (0) target = $region13
    $region12: #{tpu_custom_call.1} parent=1 // pred_region
      _
    $region13: #{tpu_custom_call.1} parent=1 // pred_fallthru
      _
    // Predicated region
    $region14: #{tpu_custom_call.1} parent=1 // pred_check
      _
    $region15: #{tpu_custom_call.1} parent=1 // pred_check_branch
      %37 = sbr.rel (0) target = $region17
    $region16: #{tpu_custom_call.1} parent=1 // pred_region
      %s39 = ssub.s32 1024, 1024
      %40 = vsyncadd [#allocation5], %s39
      %s41 = sshll.u32 [#allocation6], 4
      %s42 = int_to_ptr.vmem [resolvable:$true] %s41
      %47 = dma.hbm_to_vmem [thread:$0]  %s3, 1024, %s42, [#allocation5], 64, 64, 4
    $region17: #{tpu_custom_call.1} parent=1 // pred_fallthru
      _
    // Predicated region
    $region18: #{tpu_custom_call.1} parent=1 // pred_check
      _
    $region19: #{tpu_custom_call.1} parent=1 // pred_check_branch
      %49 = sbr.rel (0) target = $region21
    $region20: #{tpu_custom_call.1} parent=1 // pred_region
      _
    $region21: #{tpu_custom_call.1} parent=1 // pred_fallthru
      _
    // Predicated region
    $region22: #{tpu_custom_call.1} parent=1 // pred_check
      _
    $region23: #{tpu_custom_call.1} parent=1 // pred_check_branch
      %51 = sbr.rel (0) target = $region25
    $region24: #{tpu_custom_call.1} parent=1 // pred_region
      %52 = dma.done [#allocation3], 256
    $region25: #{tpu_custom_call.1} parent=1 // pred_fallthru
      _
    // Predicated region
    $region26: #{tpu_custom_call.1} parent=1 // pred_check
      _
    $region27: #{tpu_custom_call.1} parent=1 // pred_check_branch
      %54 = sbr.rel (0) target = $region29
    $region28: #{tpu_custom_call.1} parent=1 // pred_region
      %55 = dma.done [#allocation5], 2048
    $region29: #{tpu_custom_call.1} parent=1 // pred_fallthru
      _
    // Predicated region
    $region30: #{tpu_custom_call.1} parent=1 // pred_check
      _
    $region31: #{tpu_custom_call.1} parent=1 // pred_check_branch
      %57 = sbr.rel (0) target = $region33
    $region32: #{tpu_custom_call.1} parent=1 // pred_region
      %58 = dma.done [#allocation5], 1024
    $region33: #{tpu_custom_call.1} parent=1 // pred_fallthru
      _
    %v60 = vld [vmem:[#allocation2] sm:$0xff]
    %v61 = vld [vmem:[#allocation2 + $0x8] sm:$0xff]
    %v62 = vpack.c.bf16 %v60, %v60
    %v63 = vpack.c.bf16 %v61, %v61
    %v64 = vld [vmem:[#allocation4] sm:$0xf]
    %v65 = vld [vmem:[#allocation4 + $0x4] sm:$0xf]
    %v66 = vld [vmem:[#allocation4 + $0x8] sm:$0xf]
    %v67 = vld [vmem:[#allocation4 + $0xc] sm:$0xf]
    %v68 = vld [vmem:[#allocation4 + $0x10] sm:$0xf]
    %v69 = vld [vmem:[#allocation4 + $0x14] sm:$0xf]
    %v70 = vld [vmem:[#allocation4 + $0x18] sm:$0xf]
    %v71 = vld [vmem:[#allocation4 + $0x1c] sm:$0xf]
    %v72 = vld [vmem:[#allocation4 + $0x20] sm:$0xf]
    %v73 = vld [vmem:[#allocation4 + $0x24] sm:$0xf]
    %v74 = vld [vmem:[#allocation4 + $0x28] sm:$0xf]
    %v75 = vld [vmem:[#allocation4 + $0x2c] sm:$0xf]
    %v76 = vld [vmem:[#allocation4 + $0x30] sm:$0xf]
    %v77 = vld [vmem:[#allocation4 + $0x34] sm:$0xf]
    %v78 = vld [vmem:[#allocation4 + $0x38] sm:$0xf]
    %v79 = vld [vmem:[#allocation4 + $0x3c] sm:$0xf]
    %v80 = vld [vmem:[#allocation4 + $0x40] sm:$0xf]
    %v81 = vld [vmem:[#allocation4 + $0x44] sm:$0xf]
    %v82 = vld [vmem:[#allocation4 + $0x48] sm:$0xf]
    %v83 = vld [vmem:[#allocation4 + $0x4c] sm:$0xf]
    %v84 = vld [vmem:[#allocation4 + $0x50] sm:$0xf]
    %v85 = vld [vmem:[#allocation4 + $0x54] sm:$0xf]
    %v86 = vld [vmem:[#allocation4 + $0x58] sm:$0xf]
    %v87 = vld [vmem:[#allocation4 + $0x5c] sm:$0xf]
    %v88 = vld [vmem:[#allocation4 + $0x60] sm:$0xf]
    %v89 = vld [vmem:[#allocation4 + $0x64] sm:$0xf]
    %v90 = vld [vmem:[#allocation4 + $0x68] sm:$0xf]
    %v91 = vld [vmem:[#allocation4 + $0x6c] sm:$0xf]
    %v92 = vld [vmem:[#allocation4 + $0x70] sm:$0xf]
    %v93 = vld [vmem:[#allocation4 + $0x74] sm:$0xf]
    %v94 = vld [vmem:[#allocation4 + $0x78] sm:$0xf]
    %v95 = vld [vmem:[#allocation4 + $0x7c] sm:$0xf]
    %v96 = vld [vmem:[%s2] sm:$0x1]
    %v98 = vlaneseq
    %v99 = vshrl.u32 %v98, 7
    %v100 = vsub.s32 0, %v99
    %v101 = vrot.slane %v96, %v100
    %v135 = vunpack.c.l.b16 %v64
    %v136 = vunpack.c.l.b16 %v65
    %v137 = vunpack.c.l.b16 %v66
    %v138 = vunpack.c.l.b16 %v67
    %v139 = vunpack.c.l.b16 %v68
    %v140 = vunpack.c.l.b16 %v69
    %v141 = vunpack.c.l.b16 %v70
    %v142 = vunpack.c.l.b16 %v71
    %v143 = vunpack.c.l.b16 %v72
    %v144 = vunpack.c.l.b16 %v73
    %v145 = vunpack.c.l.b16 %v74
    %v146 = vunpack.c.l.b16 %v75
    %v147 = vunpack.c.l.b16 %v76
    %v148 = vunpack.c.l.b16 %v77
    %v149 = vunpack.c.l.b16 %v78
    %v150 = vunpack.c.l.b16 %v79
    %v151 = vunpack.c.l.b16 %v80
    %v152 = vunpack.c.l.b16 %v81
    %v153 = vunpack.c.l.b16 %v82
    %v154 = vunpack.c.l.b16 %v83
    %v155 = vunpack.c.l.b16 %v84
    %v156 = vunpack.c.l.b16 %v85
    %v157 = vunpack.c.l.b16 %v86
    %v158 = vunpack.c.l.b16 %v87
    %v159 = vunpack.c.l.b16 %v88
    %v160 = vunpack.c.l.b16 %v89
    %v161 = vunpack.c.l.b16 %v90
    %v162 = vunpack.c.l.b16 %v91
    %v163 = vunpack.c.l.b16 %v92
    %v164 = vunpack.c.l.b16 %v93
    %v165 = vunpack.c.l.b16 %v94
    %v166 = vunpack.c.l.b16 %v95
    %v167 = vpack.c.b16 %v136, %v135
    %v168 = vpack.c.b16 %v138, %v137
    %v169 = vpack.c.b16 %v140, %v139
    %v170 = vpack.c.b16 %v142, %v141
    %v171 = vpack.c.b16 %v144, %v143
    %v172 = vpack.c.b16 %v146, %v145
    %v173 = vpack.c.b16 %v148, %v147
    %v174 = vpack.c.b16 %v150, %v149
    %v175 = vpack.c.b16 %v152, %v151
    %v176 = vpack.c.b16 %v154, %v153
    %v177 = vpack.c.b16 %v156, %v155
    %v178 = vpack.c.b16 %v158, %v157
    %v179 = vpack.c.b16 %v160, %v159
    %v180 = vpack.c.b16 %v162, %v161
    %v181 = vpack.c.b16 %v164, %v163
    %v182 = vpack.c.b16 %v166, %v165
    %199 = vmatprep.subr.bf16.mxu0 0
    %200 = vmatpush1.bf16.msra.mxu0 %v174
    %201 = vmatprep.subr.bf16.mxu0 0
    %202 = vmatpush1.bf16.msra.mxu0 %v173
    %203 = vmatprep.subr.bf16.mxu0 0
    %204 = vmatpush1.bf16.msra.mxu0 %v172
    %205 = vmatprep.subr.bf16.mxu0 0
    %206 = vmatpush1.bf16.msra.mxu0 %v171
    %207 = vmatprep.subr.bf16.mxu0 0
    %208 = vmatpush1.bf16.msra.mxu0 %v170
    %209 = vmatprep.subr.bf16.mxu0 0
    %210 = vmatpush1.bf16.msra.mxu0 %v169
    %211 = vmatprep.subr.bf16.mxu0 0
    %212 = vmatpush1.bf16.msra.mxu0 %v168
    %213 = vmatprep.subr.bf16.mxu0 0
    %214 = vmatpush1.bf16.msra.mxu0 %v167
    %215 = vmatprep.subr.bf16.mxu0 0
    %216 = vmatpush2.bf16.msra.mxu0 %v182
    %217 = vmatprep.subr.bf16.mxu0 0
    %218 = vmatpush2.bf16.msra.mxu0 %v181
    %219 = vmatprep.subr.bf16.mxu0 0
    %220 = vmatpush2.bf16.msra.mxu0 %v180
    %221 = vmatprep.subr.bf16.mxu0 0
    %222 = vmatpush2.bf16.msra.mxu0 %v179
    %223 = vmatprep.subr.bf16.mxu0 0
    %224 = vmatpush2.bf16.msra.mxu0 %v178
    %225 = vmatprep.subr.bf16.mxu0 0
    %226 = vmatpush2.bf16.msra.mxu0 %v177
    %227 = vmatprep.subr.bf16.mxu0 0
    %228 = vmatpush2.bf16.msra.mxu0 %v176
    %229 = vmatprep.subr.bf16.mxu0 0
    %230 = vmatpush2.bf16.msra.mxu0 %v175
    %231 = vmatprep.mubr.bf16.mxu0 %v63
    %232 = vmatmul.mubr.bf16.gmra.mxu0 %v62
    %v233 = vpop.f32.mrf.mxu0
    %v234 = vadd.f32 %v101, %v233
    %v235 = vpop.f32.mrf.mxu0
    %v236 = vpop.f32.mrf.mxu0
    %v237 = vpop.f32.mrf.mxu0
    %238 = vdwg.mxu0
    %v239 = vmul.f32 %v234, 0.5
    %v240 = vmul.f32 %v234, 0.70710677
    %v241 = verf.f32.pop %v240
    %v242 = vadd.f32 %v241, 1.0
    %v243 = vmul.f32 %v239, %v242
    %v244 = vpack.c.bf16 %v243, %v243
    %v245 = vld [vmem:[#allocation6] sm:$0xf]
    %v246 = vld [vmem:[#allocation6 + $0x4] sm:$0xf]
    %v247 = vld [vmem:[#allocation6 + $0x8] sm:$0xf]
    %v248 = vld [vmem:[#allocation6 + $0xc] sm:$0xf]
    %v249 = vld [vmem:[#allocation6 + $0x10] sm:$0xf]
    %v250 = vld [vmem:[#allocation6 + $0x14] sm:$0xf]
    %v251 = vld [vmem:[#allocation6 + $0x18] sm:$0xf]
    %v252 = vld [vmem:[#allocation6 + $0x1c] sm:$0xf]
    %v253 = vld [vmem:[#allocation6 + $0x20] sm:$0xf]
    %v254 = vld [vmem:[#allocation6 + $0x24] sm:$0xf]
    %v255 = vld [vmem:[#allocation6 + $0x28] sm:$0xf]
    %v256 = vld [vmem:[#allocation6 + $0x2c] sm:$0xf]
    %v257 = vld [vmem:[#allocation6 + $0x30] sm:$0xf]
    %v258 = vld [vmem:[#allocation6 + $0x34] sm:$0xf]
    %v259 = vld [vmem:[#allocation6 + $0x38] sm:$0xf]
    %v260 = vld [vmem:[#allocation6 + $0x3c] sm:$0xf]
    %v277 = vunpack.c.l.b16 %v245
    %v278 = vunpack.c.l.b16 %v246
    %v279 = vunpack.c.l.b16 %v247
    %v280 = vunpack.c.l.b16 %v248
    %v281 = vunpack.c.l.b16 %v249
    %v282 = vunpack.c.l.b16 %v250
    %v283 = vunpack.c.l.b16 %v251
    %v284 = vunpack.c.l.b16 %v252
    %v285 = vunpack.c.l.b16 %v253
    %v286 = vunpack.c.l.b16 %v254
    %v287 = vunpack.c.l.b16 %v255
    %v288 = vunpack.c.l.b16 %v256
    %v289 = vunpack.c.l.b16 %v257
    %v290 = vunpack.c.l.b16 %v258
    %v291 = vunpack.c.l.b16 %v259
    %v292 = vunpack.c.l.b16 %v260
    %v293 = vpack.c.b16 %v278, %v277
    %v294 = vpack.c.b16 %v280, %v279
    %v295 = vpack.c.b16 %v282, %v281
    %v296 = vpack.c.b16 %v284, %v283
    %v297 = vpack.c.b16 %v286, %v285
    %v298 = vpack.c.b16 %v288, %v287
    %v299 = vpack.c.b16 %v290, %v289
    %v300 = vpack.c.b16 %v292, %v291
    %309 = vmatprep.subr.bf16.mxu0 0
    %310 = vmatpush1.bf16.msra.mxu0 %v300
    %311 = vmatprep.subr.bf16.mxu0 0
    %312 = vmatpush1.bf16.msra.mxu0 %v299
    %313 = vmatprep.subr.bf16.mxu0 0
    %314 = vmatpush1.bf16.msra.mxu0 %v298
    %315 = vmatprep.subr.bf16.mxu0 0
    %316 = vmatpush1.bf16.msra.mxu0 %v297
    %317 = vmatprep.subr.bf16.mxu0 0
    %318 = vmatpush1.bf16.msra.mxu0 %v296
    %319 = vmatprep.subr.bf16.mxu0 0
    %320 = vmatpush1.bf16.msra.mxu0 %v295
    %321 = vmatprep.subr.bf16.mxu0 0
    %322 = vmatpush1.bf16.msra.mxu0 %v294
    %323 = vmatprep.subr.bf16.mxu0 0
    %324 = vmatpush1.bf16.msra.mxu0 %v293
    %325 = vmatprep.subr.bf16.mxu0 0
    %326 = vmatpush2.bf16.msra.mxu0 0
    %327 = vmatprep.subr.bf16.mxu0 0
    %328 = vmatpush2.bf16.msra.mxu0 0
    %329 = vmatprep.subr.bf16.mxu0 0
    %330 = vmatpush2.bf16.msra.mxu0 0
    %331 = vmatprep.subr.bf16.mxu0 0
    %332 = vmatpush2.bf16.msra.mxu0 0
    %333 = vmatprep.subr.bf16.mxu0 0
    %334 = vmatpush2.bf16.msra.mxu0 0
    %335 = vmatprep.subr.bf16.mxu0 0
    %336 = vmatpush2.bf16.msra.mxu0 0
    %337 = vmatprep.subr.bf16.mxu0 0
    %338 = vmatpush2.bf16.msra.mxu0 0
    %339 = vmatprep.subr.bf16.mxu0 0
    %340 = vmatpush2.bf16.msra.mxu0 0
    %341 = vmatprep.mubr.bf16.mxu0 0
    %342 = vmatmul.mubr.bf16.gmra.mxu0 %v244
    %v343 = vpop.f32.mrf.mxu0
    %v344 = vadd.f32 0.0, %v343
    %v345 = vpop.f32.mrf.mxu0
    %v346 = vpop.f32.mrf.mxu0
    %v347 = vpop.f32.mrf.mxu0
    %348 = vdwg.mxu0
    %v349 = vld [vmem:[%s4] sm:$0x1]
    %v351 = vlaneseq
    %v352 = vshrl.u32 %v351, 7
    %v353 = vsub.s32 0, %v352
    %v354 = vrot.slane %v349, %v353
    %v356 = vadd.f32 %v344, %v354
    %vm357 = vcmask 31744
    %358 = vst.msk [vmem:[%s5] sm:$0xff] %vm357, %v356
    // Predicated region
    $region34: #{tpu_custom_call.1} parent=1 // pred_check
      _
    $region35: #{tpu_custom_call.1} parent=1 // pred_check_branch
      %360 = sbr.rel (0) target = $region37
    $region36: #{tpu_custom_call.1} parent=1 // pred_region
      _
    $region37: #{tpu_custom_call.1} parent=1 // pred_fallthru
      _
    // Predicated region
    $region38: #{tpu_custom_call.1} parent=1 // pred_check
      _
    $region39: #{tpu_custom_call.1} parent=1 // pred_check_branch
      %362 = sbr.rel (0) target = $region41
    $region40: #{tpu_custom_call.1} parent=1 // pred_region
      _
    $region41: #{tpu_custom_call.1} parent=1 // pred_fallthru
      _
    %363 = vsyncpa [#allocation3], 1
    %364 = vsyncpa [#allocation5], 1

</llo_original>
